<compile_context>
chip_gen: v5e
topology: v5e:2x2
jax: 0.10.0
libtpu: 0.0.40
codegen_flags: <defaults>
</compile_context>

<pallas_src>
import jax
import jax.numpy as jnp
from jax.experimental import pallas as pl
from jax.experimental.pallas import tpu as pltpu

_LANES = 512  # lane-dense slab width (multiple of 128)


def relu_kernel(x_ref, o_ref):
    # Pure VPU elementwise max; in/out dtypes are identical, no cast needed.
    o_ref[...] = jnp.maximum(x_ref[...], 0)


def trivial_net_forward(x):
    """ReLU(x) via a Pallas TPU kernel (layout-agnostic, any-rank input)."""
    orig_shape = x.shape
    total = x.size
    if total == 0:
        return x

    itemsize = jnp.dtype(x.dtype).itemsize
    flat = x.reshape(-1)

    # Rows needed at a lane-dense width of _LANES.
    rows = pl.cdiv(total, _LANES)

    # ~4 MiB blocks -> 2 buffers x (in + out) ~= 16 MiB in flight:
    # comfortably inside the 32 MiB scoped default and v7x's 64 MiB VMEM.
    target_block_bytes = 4 * 1024 * 1024
    tile_rows = max(8, (target_block_bytes // (_LANES * itemsize)) // 8 * 8)

    if rows <= tile_rows:
        # Tiny-input fast path: single full-extent block, grid=(1,).
        tile_rows = rows
        grid_rows = rows
    else:
        # Pad rows so the grid divides evenly -> every block full & unmasked.
        grid_rows = pl.cdiv(rows, tile_rows) * tile_rows

    padded_total = grid_rows * _LANES
    if padded_total != total:
        flat = jnp.pad(flat, (0, padded_total - total))

    x2 = flat.reshape(grid_rows, _LANES)
    grid = (grid_rows // tile_rows,)

    out2 = pl.pallas_call(
        relu_kernel,
        out_shape=jax.ShapeDtypeStruct((grid_rows, _LANES), x.dtype),
        grid_spec=pltpu.PrefetchScalarGridSpec(
            num_scalar_prefetch=0,
            grid=grid,
            in_specs=[pl.BlockSpec((tile_rows, _LANES), lambda i: (i, 0))],
            out_specs=pl.BlockSpec((tile_rows, _LANES), lambda i: (i, 0)),
        ),
        compiler_params=pltpu.CompilerParams(
            # Parallel row axis: lets v7x shard grid steps across its 2 TCs.
            dimension_semantics=("parallel",),
            # Explicit (conservative) VMEM cap; actual in-flight use ~16 MiB,
            # safe on all of v5e/v6e (128 MiB) and v7x (64 MiB).
            vmem_limit_bytes=32 * 1024 * 1024,
        ),
        # Pure-bandwidth op hint for XLA's scheduler.
        cost_estimate=pl.CostEstimate(
            flops=0,
            transcendentals=0,
            bytes_accessed=2 * padded_total * itemsize,
        ),
    )(x2)

    # Drop tail padding (if any) and restore the original shape.
    return out2.reshape(-1)[:total].reshape(orig_shape)


if __name__ == "__main__":
    key = jax.random.PRNGKey(0)
    # NCHW input, small shape consistent with the module's expected input.
    x = jax.random.normal(key, (2, 4, 16, 16), dtype=jnp.float32)

    y = trivial_net_forward(x)
    jax.block_until_ready(y)

    # Correctness check against the pure-JAX reference (ReLU).
    y_ref = jnp.maximum(x, 0.0)
    assert y.shape == x.shape and y.dtype == x.dtype
    assert jnp.allclose(y, y_ref), "Pallas ReLU mismatch vs reference"

    print("KERNEL_OK")
</pallas_src>

<mosaic_0001>
module attributes {stable_mosaic.version = 11 : i64} {
  func.func @relu_kernel(%arg0: i32, %arg1: memref<4x512xf32, #tpu.memory_space<vmem>>, %arg2: memref<4x512xf32, #tpu.memory_space<vmem>>) attributes {dimension_semantics = [#tpu.dimension_semantics<parallel>], iteration_bounds = array<i64: 1>, scalar_prefetch = 0 : i64, scratch_operands = 0 : i64, tpu.core_type = #tpu.core_type<tc>, window_params = [{transform_indices = @transform_0, window_bounds = array<i64: 4, 512>}, {transform_indices = @transform_1, window_bounds = array<i64: 4, 512>}]} {
    %c0 = arith.constant 0 : index
    %c0_0 = arith.constant 0 : index
    %0 = vector.load %arg1[%c0, %c0_0] : memref<4x512xf32, #tpu.memory_space<vmem>>, vector<4x512xf32>
    %cst = arith.constant 0.000000e+00 : f32
    %1 = vector.broadcast %cst : f32 to vector<4x512xf32>
    %2 = arith.maximumf %0, %1 : vector<4x512xf32>
    %c0_1 = arith.constant 0 : index
    %c0_2 = arith.constant 0 : index
    %3 = vector.load %arg2[%c0_1, %c0_2] : memref<4x512xf32, #tpu.memory_space<vmem>>, vector<4x512xf32>
    tpu.vector_store %arg2[%c0_1, %c0_2], %2 {strides = array<i32>} : memref<4x512xf32, #tpu.memory_space<vmem>>, vector<4x512xf32>,
    return
  }
  func.func @transform_0(%arg0: i32) -> (i32, i32) {
    %c0_i32 = arith.constant 0 : i32
    %c0_i32_0 = arith.constant 0 : i32
    return %arg0, %c0_i32 : i32, i32
  }
  func.func @transform_1(%arg0: i32) -> (i32, i32) {
    %c0_i32 = arith.constant 0 : i32
    %c0_i32_0 = arith.constant 0 : i32
    return %arg0, %c0_i32 : i32, i32
  }
}

</mosaic_0001>

<llo_original>
// kernel: tpu_custom_call.1
$region0: #{tpu_custom_call.1}
  #allocation0 [shape = 'u32[]', space=smem, size = 0x4, offset = 0x4, fixed_abs, tag = 'smem constant byte address 0x4 - core index']
  #allocation1 [shape = 'u32[72,128]{1,0:T(1,128)}', space=vmem, size = 0x9000, scoped, tag = 'internal scratch']
  %s0 = inlined_call_operand.hbm [shape: f32[4,512], index: 0, kind: input, shape index: {}]
  %s1 = inlined_call_operand.hbm [shape: f32[4,512], index: 1, kind: output, shape index: {}]
  %s2 = sld [smem:[#allocation0]]
  $region18: #{tpu_custom_call.1} parent=0
    _
  %s4 = ssub.s32 1, %s2
  %s5 = scalar_select 0, %s4, %s2
  $region1: #{tpu_custom_call.1} parent=0
    #allocation2 [shape = 'u8[8192]{0}', space=vmem, size = 0x2000, scoped, tag = 'input window, operand 0, single buffered']
    #allocation3 [shape = 's32[1]{0}', space=sflag, size = 0x4, scoped, tag = 'scoped memory for tpu_custom_call.1']
    #allocation4 [shape = 's32[1]{0}', space=sflag, size = 0x4, scoped, tag = 'scoped memory for tpu_custom_call.1']
    #allocation5 [shape = 'u8[8192]{0}', space=vmem, size = 0x2000, scoped, tag = 'output window, operand 0, single buffered']
    %6 = vsyncpa [#allocation3], 0
    %7 = vsyncpa [#allocation4], 0
    // Predicated region
    $region2: #{tpu_custom_call.1} parent=1 // pred_check
      _
    $region3: #{tpu_custom_call.1} parent=1 // pred_check_branch
      %9 = sbr.rel (0) target = $region5
    $region4: #{tpu_custom_call.1} parent=1 // pred_region
      %11 = vsyncadd [#allocation3], 0
      %s13 = sshll.u32 %s0, 4
      %s14 = int_to_ptr.hbm [resolvable:$true] %s13
      %s15 = sshll.u32 [#allocation2], 4
      %s16 = int_to_ptr.vmem [resolvable:$true] %s15
      %18 = dma.hbm_to_vmem [thread:$0]  %s14, 256, %s16, [#allocation3]
    $region5: #{tpu_custom_call.1} parent=1 // pred_fallthru
      _
    // Predicated region
    $region6: #{tpu_custom_call.1} parent=1 // pred_check
      _
    $region7: #{tpu_custom_call.1} parent=1 // pred_check_branch
      %20 = sbr.rel (0) target = $region9
    $region8: #{tpu_custom_call.1} parent=1 // pred_region
      %22 = dma.done [#allocation3], 256
    $region9: #{tpu_custom_call.1} parent=1 // pred_fallthru
      _
    %v23 = vld [vmem:[#allocation2] sm:$0xff]
    %v24 = vld [vmem:[#allocation2 + $0x8] sm:$0xff]
    %v25 = vmax.f32 %v23, 0.0
    %v26 = vmax.f32 %v24, 0.0
    %27 = vst [vmem:[#allocation5] sm:$0xff] %v25
    %28 = vst [vmem:[#allocation5 + $0x8] sm:$0xff] %v26
    // Predicated region
    $region10: #{tpu_custom_call.1} parent=1 // pred_check
      _
    $region11: #{tpu_custom_call.1} parent=1 // pred_check_branch
      %30 = sbr.rel (0) target = $region13
    $region12: #{tpu_custom_call.1} parent=1 // pred_region
      %32 = vsyncadd [#allocation4], 0
      %s34 = sshll.u32 [#allocation5], 4
      %s35 = int_to_ptr.vmem [resolvable:$true] %s34
      %s36 = sshll.u32 %s1, 4
      %s37 = int_to_ptr.hbm [resolvable:$true] %s36
      %39 = dma.vmem_to_hbm [thread:$0]  %s35, 256, %s37, [#allocation4]
    $region13: #{tpu_custom_call.1} parent=1 // pred_fallthru
      _
    // Predicated region
    $region14: #{tpu_custom_call.1} parent=1 // pred_check
      _
    $region15: #{tpu_custom_call.1} parent=1 // pred_check_branch
      %41 = sbr.rel (0) target = $region17
    $region16: #{tpu_custom_call.1} parent=1 // pred_region
      %43 = dma.done [#allocation4], 256
    $region17: #{tpu_custom_call.1} parent=1 // pred_fallthru
      _
    %44 = vsyncpa [#allocation3], 1
    %45 = vsyncpa [#allocation4], 1

</llo_original>
